<compile_context>
chip_gen: v7x
topology: tpu7x:2x2x1
jax: 0.10.0
libtpu: 0.0.40
codegen_flags: <defaults>
</compile_context>

<pallas_src>
import functools

import jax
import jax.numpy as jnp
from jax.experimental import pallas as pl
from jax.experimental.pallas import tpu as pltpu


def _round_up(x, m):
    return ((x + m - 1) // m) * m


def _pad_feature_dim(d):
    # Lane-dense (multiple-of-128) padding only for dims already >128; for tiny
    # dims a full-extent block is legal and padding would multiply HBM
    # writeback bytes (O=8 -> 128 is 16x) on a mem-bound kernel.
    if d > 128 and d % 128 != 0:
        return _round_up(d, 128)
    return d


def _vmem_capacity_bytes():
    try:
        info = pltpu.get_tpu_info()
        cap = getattr(info, "vmem_capacity_bytes", None)
        if cap:
            return int(cap)
    except Exception:
        pass
    return 64 * 1024 * 1024  # conservative (v7x per-TC VMEM)


def _make_kernel(has_mask, has_bias, use_bf16_mxu):
    def kernel(*refs):
        it = iter(refs)
        x_ref = next(it)
        mask_ref = next(it) if has_mask else None
        bias_ref = next(it) if has_bias else None
        w1_ref = next(it)
        b1_ref = next(it)
        w2_ref = next(it)
        b2_ref = next(it)
        out_ref = next(it)
        h3_ref = next(it)

        x = x_ref[...].astype(jnp.float32)
        if has_mask:
            # Elementwise mask (PyTorch does x * mask) on the VPU, f32.
            x = x * mask_ref[...].astype(jnp.float32)

        mm_dtype = jnp.bfloat16 if use_bf16_mxu else jnp.float32

        # fc1 on the MXU, f32 accumulation.
        h = jnp.dot(x.astype(mm_dtype), w1_ref[...].astype(mm_dtype),
                    preferred_element_type=jnp.float32)
        h = jnp.maximum(h + b1_ref[...].astype(jnp.float32), jnp.float32(0.0))
        if has_bias:
            # (1, Hp) broadcast bias or (TB, Hp) per-row bias; both add for free
            # on the VPU.
            h = h + bias_ref[...].astype(jnp.float32)
        h3_ref[...] = h.astype(h3_ref.dtype)

        # fc2 on the MXU.
        out = jnp.dot(h.astype(mm_dtype), w2_ref[...].astype(mm_dtype),
                      preferred_element_type=jnp.float32)
        out_ref[...] = (out + b2_ref[...].astype(jnp.float32)).astype(out_ref.dtype)

    return kernel


def prepare_weights(w1_t, b1, w2_t, b2, use_bf16_mxu=False):
    """Pad/cast the weights ONCE (hoisted out of the per-call path).

    w1_t: (I, H) transposed fc1.weight, w2_t: (H, O) transposed fc2.weight.
    Returns an opaque tuple to pass to masked_perceptron().
    """
    I, H = w1_t.shape
    O = w2_t.shape[1]
    Hp = _pad_feature_dim(H)
    Op = _pad_feature_dim(O)
    w_dtype = jnp.bfloat16 if use_bf16_mxu else jnp.float32

    def pad2(a, rows, cols, dtype=jnp.float32):
        a = jnp.asarray(a, jnp.float32)
        a = jnp.pad(a, ((0, rows - a.shape[0]), (0, cols - a.shape[1])))
        return a.astype(dtype)

    w1p = pad2(w1_t, I, Hp, w_dtype)
    w2p = pad2(w2_t, Hp, Op, w_dtype)
    b1p = pad2(jnp.reshape(jnp.asarray(b1, jnp.float32), (1, H)), 1, Hp)
    b2p = pad2(jnp.reshape(jnp.asarray(b2, jnp.float32), (1, O)), 1, Op)
    return (w1p, b1p, w2p, b2p, int(H), int(O), bool(use_bf16_mxu))


def masked_perceptron(x, prepared, mask=None, bias=None):
    """Fused forward pass. Returns (out, h3) in float32."""
    w1p, b1p, w2p, b2p, H, O, use_bf16_mxu = prepared
    return _masked_perceptron_impl(x, w1p, b1p, w2p, b2p, mask, bias,
                                   H=H, O=O, use_bf16_mxu=use_bf16_mxu)


@functools.partial(jax.jit, static_argnames=("H", "O", "use_bf16_mxu"))
def _masked_perceptron_impl(x, w1p, b1p, w2p, b2p, mask, bias, *,
                            H, O, use_bf16_mxu):
    B, I = x.shape
    Hp = w1p.shape[1]
    Op = w2p.shape[1]
    has_mask = mask is not None
    has_bias = bias is not None

    # Classify bias: broadcast (H,)/(1,H) vs per-row (B,H).
    bias_per_row = False
    b = None
    if has_bias:
        b = jnp.asarray(bias, jnp.float32)
        if b.ndim == 1 or b.shape[0] == 1:
            b = jnp.reshape(b, (1, H))
        else:
            bias_per_row = True
            b = jnp.broadcast_to(b, (B, H))
        if Hp != H:
            b = jnp.pad(b, ((0, 0), (0, Hp - H)))

    # ---- VMEM budgeting (resident weights single-buffered, rows double-buf) --
    f32b = 4
    wbytes = 2 if use_bf16_mxu else 4
    resident = (I * Hp + Hp * Op) * wbytes + 8 * (Hp + Op) * f32b
    if has_bias and not bias_per_row:
        resident += 8 * Hp * f32b
    stream_row = (I + Hp + Op) * f32b                     # x, h3, out
    if has_mask:
        stream_row += I * f32b
    if has_bias and bias_per_row:
        stream_row += Hp * f32b
    per_row = 2 * stream_row                              # default double buffer

    cap = _vmem_capacity_bytes()
    vmem_limit = min(cap * 3 // 4, 96 * 1024 * 1024)      # 96MiB v5e/v6e, 48MiB v7x
    headroom = 2 * 1024 * 1024
    avail = vmem_limit - resident - headroom
    # TODO(synk): if `avail` goes negative (very large I/H/O), switch to a
    # blocked contraction-axis variant with a VMEM accumulator instead of fully
    # resident weights; not needed at these sizes.

    align = 16 if use_bf16_mxu else 8                     # bf16 packs 16 sublanes
    TB_cap = max(align, (max(avail, 0) // max(per_row, 1)) // align * align)
    TB_cap = min(TB_cap, 2048)

    B_aligned = _round_up(B, align)
    # Guarantee >=2 grid steps when the batch allows it, so the "parallel"
    # batch axis can shard across v7x's two TensorCores.
    if B_aligned >= 2 * align:
        TB_cap = min(TB_cap, _round_up(-(-B_aligned // 2), align))
    TB_cap = min(TB_cap, B_aligned)
    TB_cap = max(TB_cap, align)

    # Prefer a tile that divides B exactly (no jnp.pad HBM copy of x / mask),
    # but never shrink the tile by more than 2x for it.
    TB = TB_cap
    for t in range(TB_cap, max(align, TB_cap // 2) - 1, -align):
        if B % t == 0:
            TB = t
            break
    Bp = _round_up(B, TB)
    grid = (Bp // TB,)

    # ---- operands / specs ----------------------------------------------------
    def pad_rows(a, rows):
        if a.shape[0] == rows:
            return a
        return jnp.pad(a, ((0, rows - a.shape[0]), (0, 0)))

    def row_spec(cols):
        return pl.BlockSpec((TB, cols), lambda i: (i, 0))

    def res_spec(shape):
        # Block-invariant operand: fetch once, keep a single VMEM buffer.
        return pl.BlockSpec(shape, lambda i: (0, 0), pipeline_mode=pl.Buffered(1))

    operands = [pad_rows(x.astype(jnp.float32), Bp)]
    in_specs = [row_spec(I)]

    if has_mask:
        operands.append(pad_rows(mask.astype(jnp.float32), Bp))
        in_specs.append(row_spec(I))

    if has_bias:
        if bias_per_row:
            operands.append(pad_rows(b, Bp))
            in_specs.append(row_spec(Hp))
        else:
            operands.append(b)
            in_specs.append(res_spec((1, Hp)))

    operands += [w1p, b1p, w2p, b2p]
    in_specs += [res_spec((I, Hp)), res_spec((1, Hp)),
                 res_spec((Hp, Op)), res_spec((1, Op))]

    flops = 2 * Bp * (I * Hp + Hp * Op)
    bytes_accessed = (sum(int(a.size) * a.dtype.itemsize for a in operands)
                      + Bp * (Op + Hp) * f32b)

    out_p, h3_p = pl.pallas_call(
        _make_kernel(has_mask, has_bias, use_bf16_mxu),
        out_shape=(jax.ShapeDtypeStruct((Bp, Op), jnp.float32),
                   jax.ShapeDtypeStruct((Bp, Hp), jnp.float32)),
        grid=grid,
        in_specs=in_specs,
        out_specs=(row_spec(Op), row_spec(Hp)),
        compiler_params=pltpu.CompilerParams(
            dimension_semantics=("parallel",),
            vmem_limit_bytes=int(vmem_limit)),
        cost_estimate=pl.CostEstimate(flops=int(flops), transcendentals=0,
                                      bytes_accessed=int(bytes_accessed)),
    )(*operands)

    out = out_p[:B, :O] if (Bp != B or Op != O) else out_p
    h3 = h3_p[:B, :H] if (Bp != B or Hp != H) else h3_p
    return out, h3


def _init_linear(key, fan_in, fan_out):
    """Deterministic init mimicking nn.Linear default U[-1/sqrt(fan_in), ...]."""
    kw, kb = jax.random.split(key)
    bound = 1.0 / jnp.sqrt(fan_in)
    # PyTorch stores (out, in); we keep the transposed (in, out) form.
    w_t = jax.random.uniform(kw, (fan_in, fan_out), jnp.float32, -bound, bound)
    b = jax.random.uniform(kb, (fan_out,), jnp.float32, -bound, bound)
    return w_t, b


def _ref_forward(x, w1_t, b1, w2_t, b2, mask=None, bias=None):
    m = x * mask if mask is not None else x
    h3 = jnp.maximum(m @ w1_t + b1, 0.0)
    if bias is not None:
        h3 = h3 + bias
    return h3 @ w2_t + b2, h3


if __name__ == "__main__":
    input_size, hidden_size, output_size = 16, 32, 8
    batch = 8

    key = jax.random.PRNGKey(0)
    k_x, k_mask, k_bias, k_fc1, k_fc2, k_x2 = jax.random.split(key, 6)

    x = jax.random.normal(k_x, (batch, input_size), jnp.float32)
    mask = (jax.random.uniform(k_mask, (batch, input_size)) > 0.5).astype(jnp.float32)
    bias_bh = jax.random.normal(k_bias, (batch, hidden_size), jnp.float32) * 0.1
    bias_h = jax.random.normal(k_bias, (hidden_size,), jnp.float32) * 0.1

    w1_t, b1 = _init_linear(k_fc1, input_size, hidden_size)
    w2_t, b2 = _init_linear(k_fc2, hidden_size, output_size)

    # Weights are padded / cast once, reused for every call below.
    params_f32 = prepare_weights(w1_t, b1, w2_t, b2, use_bf16_mxu=False)
    params_bf16 = prepare_weights(w1_t, b1, w2_t, b2, use_bf16_mxu=True)

    # 1) mask + per-row (B, H) bias
    out, h3 = masked_perceptron(x, params_f32, mask=mask, bias=bias_bh)
    jax.block_until_ready((out, h3))
    out_r, h3_r = _ref_forward(x, w1_t, b1, w2_t, b2, mask=mask, bias=bias_bh)
    assert jnp.allclose(h3, h3_r, atol=1e-5, rtol=1e-5)
    assert jnp.allclose(out, out_r, atol=1e-5, rtol=1e-5)

    # 2) no mask, broadcast (H,) bias
    out, h3 = masked_perceptron(x, params_f32, mask=None, bias=bias_h)
    jax.block_until_ready((out, h3))
    out_r, h3_r = _ref_forward(x, w1_t, b1, w2_t, b2, mask=None, bias=bias_h)
    assert jnp.allclose(h3, h3_r, atol=1e-5, rtol=1e-5)
    assert jnp.allclose(out, out_r, atol=1e-5, rtol=1e-5)

    # 3) neither mask nor bias
    out, h3 = masked_perceptron(x, params_f32)
    jax.block_until_ready((out, h3))
    out_r, h3_r = _ref_forward(x, w1_t, b1, w2_t, b2)
    assert jnp.allclose(h3, h3_r, atol=1e-5, rtol=1e-5)
    assert jnp.allclose(out, out_r, atol=1e-5, rtol=1e-5)

    # 4) larger batch -> exercises the multi-step "parallel" grid (>=2 tiles).
    x_big = jax.random.normal(k_x2, (32, input_size), jnp.float32)
    out, h3 = masked_perceptron(x_big, params_f32, bias=bias_h)
    jax.block_until_ready((out, h3))
    out_r, h3_r = _ref_forward(x_big, w1_t, b1, w2_t, b2, bias=bias_h)
    assert jnp.allclose(h3, h3_r, atol=1e-5, rtol=1e-5)
    assert jnp.allclose(out, out_r, atol=1e-5, rtol=1e-5)

    # 5) bf16-MXU path (halves weight DMA, native MXU dtype); looser tolerance.
    out, h3 = masked_perceptron(x, params_bf16, mask=mask, bias=bias_bh)
    jax.block_until_ready((out, h3))
    out_r, h3_r = _ref_forward(x, w1_t, b1, w2_t, b2, mask=mask, bias=bias_bh)
    assert jnp.allclose(h3, h3_r, atol=2e-2, rtol=2e-2)
    assert jnp.allclose(out, out_r, atol=2e-2, rtol=2e-2)

    print("KERNEL_OK")
</pallas_src>

<mosaic_0001>
module attributes {stable_mosaic.version = 11 : i64} {
  func.func @kernel(%arg0: i32, %arg1: memref<8x16xf32, #tpu.memory_space<vmem>>, %arg2: memref<8x16xf32, #tpu.memory_space<vmem>>, %arg3: memref<8x32xf32, #tpu.memory_space<vmem>>, %arg4: memref<16x32xf32, #tpu.memory_space<vmem>>, %arg5: memref<1x32xf32, #tpu.memory_space<vmem>>, %arg6: memref<32x8xf32, #tpu.memory_space<vmem>>, %arg7: memref<1x8xf32, #tpu.memory_space<vmem>>, %arg8: memref<8x8xf32, #tpu.memory_space<vmem>>, %arg9: memref<8x32xf32, #tpu.memory_space<vmem>>) attributes {dimension_semantics = [#tpu.dimension_semantics<parallel>], iteration_bounds = array<i64: 1>, scalar_prefetch = 0 : i64, scratch_operands = 0 : i64, tpu.core_type = #tpu.core_type<tc>, window_params = [{transform_indices = @transform_0, window_bounds = array<i64: 8, 16>}, {transform_indices = @transform_1, window_bounds = array<i64: 8, 16>}, {transform_indices = @transform_2, window_bounds = array<i64: 8, 32>}, {pipeline_mode = #tpu.pipeline_mode<synchronous>, transform_indices = @transform_3, window_bounds = array<i64: 16, 32>}, {pipeline_mode = #tpu.pipeline_mode<synchronous>, transform_indices = @transform_4, window_bounds = array<i64: 1, 32>}, {pipeline_mode = #tpu.pipeline_mode<synchronous>, transform_indices = @transform_5, window_bounds = array<i64: 32, 8>}, {pipeline_mode = #tpu.pipeline_mode<synchronous>, transform_indices = @transform_6, window_bounds = array<i64: 1, 8>}, {transform_indices = @transform_7, window_bounds = array<i64: 8, 8>}, {transform_indices = @transform_8, window_bounds = array<i64: 8, 32>}]} {
    %c0 = arith.constant 0 : index
    %c0_0 = arith.constant 0 : index
    %0 = vector.load %arg1[%c0, %c0_0] : memref<8x16xf32, #tpu.memory_space<vmem>>, vector<8x16xf32>
    %c0_1 = arith.constant 0 : index
    %c0_2 = arith.constant 0 : index
    %1 = vector.load %arg2[%c0_1, %c0_2] : memref<8x16xf32, #tpu.memory_space<vmem>>, vector<8x16xf32>
    %2 = arith.mulf %0, %1 : vector<8x16xf32>
    %c0_3 = arith.constant 0 : index
    %c0_4 = arith.constant 0 : index
    %3 = vector.load %arg4[%c0_3, %c0_4] : memref<16x32xf32, #tpu.memory_space<vmem>>, vector<16x32xf32>
    %cst = arith.constant dense<0.000000e+00> : vector<8x32xf32>
    %4 = tpu.matmul %2, %3, %cst {dimension_numbers = #tpu.dot_dimension_numbers<[1], [0], [0], [1], [0, 0, 1, 1], [], []>} : vector<8x16xf32>, vector<16x32xf32>, vector<8x32xf32> -> vector<8x32xf32>
    %c0_5 = arith.constant 0 : index
    %c0_6 = arith.constant 0 : index
    %5 = vector.load %arg5[%c0_5, %c0_6] : memref<1x32xf32, #tpu.memory_space<vmem>>, vector<1x32xf32>
    %6 = vector.broadcast %5 : vector<1x32xf32> to vector<8x32xf32>
    %7 = arith.addf %4, %6 : vector<8x32xf32>
    %cst_7 = arith.constant 0.000000e+00 : f32
    %8 = vector.broadcast %cst_7 : f32 to vector<8x32xf32>
    %9 = arith.maximumf %7, %8 : vector<8x32xf32>
    %c0_8 = arith.constant 0 : index
    %c0_9 = arith.constant 0 : index
    %10 = vector.load %arg3[%c0_8, %c0_9] : memref<8x32xf32, #tpu.memory_space<vmem>>, vector<8x32xf32>
    %11 = arith.addf %9, %10 : vector<8x32xf32>
    %c0_10 = arith.constant 0 : index
    %c0_11 = arith.constant 0 : index
    %12 = vector.load %arg9[%c0_10, %c0_11] : memref<8x32xf32, #tpu.memory_space<vmem>>, vector<8x32xf32>
    tpu.vector_store %arg9[%c0_10, %c0_11], %11 {strides = array<i32>} : memref<8x32xf32, #tpu.memory_space<vmem>>, vector<8x32xf32>,
    %c0_12 = arith.constant 0 : index
    %c0_13 = arith.constant 0 : index
    %13 = vector.load %arg6[%c0_12, %c0_13] : memref<32x8xf32, #tpu.memory_space<vmem>>, vector<32x8xf32>
    %cst_14 = arith.constant dense<0.000000e+00> : vector<8x8xf32>
    %14 = tpu.matmul %11, %13, %cst_14 {dimension_numbers = #tpu.dot_dimension_numbers<[1], [0], [0], [1], [0, 0, 1, 1], [], []>} : vector<8x32xf32>, vector<32x8xf32>, vector<8x8xf32> -> vector<8x8xf32>
    %c0_15 = arith.constant 0 : index
    %c0_16 = arith.constant 0 : index
    %15 = vector.load %arg7[%c0_15, %c0_16] : memref<1x8xf32, #tpu.memory_space<vmem>>, vector<1x8xf32>
    %16 = vector.broadcast %15 : vector<1x8xf32> to vector<8x8xf32>
    %17 = arith.addf %14, %16 : vector<8x8xf32>
    %c0_17 = arith.constant 0 : index
    %c0_18 = arith.constant 0 : index
    %18 = vector.load %arg8[%c0_17, %c0_18] : memref<8x8xf32, #tpu.memory_space<vmem>>, vector<8x8xf32>
    tpu.vector_store %arg8[%c0_17, %c0_18], %17 {strides = array<i32>} : memref<8x8xf32, #tpu.memory_space<vmem>>, vector<8x8xf32>,
    return
  }
  func.func @transform_0(%arg0: i32) -> (i32, i32) {
    %c0_i32 = arith.constant 0 : i32
    %c0_i32_0 = arith.constant 0 : i32
    return %arg0, %c0_i32 : i32, i32
  }
  func.func @transform_1(%arg0: i32) -> (i32, i32) {
    %c0_i32 = arith.constant 0 : i32
    %c0_i32_0 = arith.constant 0 : i32
    return %arg0, %c0_i32 : i32, i32
  }
  func.func @transform_2(%arg0: i32) -> (i32, i32) {
    %c0_i32 = arith.constant 0 : i32
    %c0_i32_0 = arith.constant 0 : i32
    return %arg0, %c0_i32 : i32, i32
  }
  func.func @transform_3(%arg0: i32) -> (i32, i32) {
    %c0_i32 = arith.constant 0 : i32
    %c0_i32_0 = arith.constant 0 : i32
    %c0_i32_1 = arith.constant 0 : i32
    return %c0_i32, %c0_i32_0 : i32, i32
  }
  func.func @transform_4(%arg0: i32) -> (i32, i32) {
    %c0_i32 = arith.constant 0 : i32
    %c0_i32_0 = arith.constant 0 : i32
    %c0_i32_1 = arith.constant 0 : i32
    return %c0_i32, %c0_i32_0 : i32, i32
  }
  func.func @transform_5(%arg0: i32) -> (i32, i32) {
    %c0_i32 = arith.constant 0 : i32
    %c0_i32_0 = arith.constant 0 : i32
    %c0_i32_1 = arith.constant 0 : i32
    return %c0_i32, %c0_i32_0 : i32, i32
  }
  func.func @transform_6(%arg0: i32) -> (i32, i32) {
    %c0_i32 = arith.constant 0 : i32
    %c0_i32_0 = arith.constant 0 : i32
    %c0_i32_1 = arith.constant 0 : i32
    return %c0_i32, %c0_i32_0 : i32, i32
  }
  func.func @transform_7(%arg0: i32) -> (i32, i32) {
    %c0_i32 = arith.constant 0 : i32
    %c0_i32_0 = arith.constant 0 : i32
    return %arg0, %c0_i32 : i32, i32
  }
  func.func @transform_8(%arg0: i32) -> (i32, i32) {
    %c0_i32 = arith.constant 0 : i32
    %c0_i32_0 = arith.constant 0 : i32
    return %arg0, %c0_i32 : i32, i32
  }
}

</mosaic_0001>

<llo_original>
// kernel: _masked_perceptron_impl.1
$region0: #{_masked_perceptron_impl.1}
  #allocation0 [shape = 'u32[]', space=smem, size = 0x4, offset = 0x4, fixed_abs, tag = 'smem constant byte address 0x4 - core index']
  #allocation1 [shape = 'u32[144,128]{1,0:T(1,128)}', space=vmem, size = 0x12000, scoped, tag = 'internal scratch']
  %s0 = inlined_call_operand.vmem [shape: f32[8,16], index: 0, kind: input, shape index: {}]
  %s1 = inlined_call_operand.vmem [shape: f32[8,16], index: 1, kind: input, shape index: {}]
  %s2 = inlined_call_operand.vmem [shape: f32[8,32], index: 2, kind: input, shape index: {}]
  %s3 = inlined_call_operand.vmem [shape: f32[16,32], index: 3, kind: input, shape index: {}]
  %s4 = inlined_call_operand.vmem [shape: f32[1,32], index: 4, kind: input, shape index: {}]
  %s5 = inlined_call_operand.vmem [shape: f32[32,8], index: 5, kind: input, shape index: {}]
  %s6 = inlined_call_operand.vmem [shape: f32[1,8], index: 6, kind: input, shape index: {}]
  %s7 = inlined_call_operand.hbm [shape: f32[8,8], index: 7, kind: output, shape index: {0}]
  %s8 = inlined_call_operand.hbm [shape: f32[8,32], index: 8, kind: output, shape index: {1}]
  %9 = xla_tuple %s7, %s8
  %s10 = sld [smem:[#allocation0]]
  $region46: #{_masked_perceptron_impl.1} parent=0
    _
  %s12 = ssub.s32 1, %s10
  %s13 = scalar_select 0, %s12, %s10
  $region1: #{_masked_perceptron_impl.1} parent=0
    #allocation2 [shape = 'u8[4096]{0}', space=vmem, size = 0x1000, scoped, tag = 'output window, operand 0, single buffered']
    #allocation3 [shape = 's32[1]{0}', space=sflag, size = 0x4, scoped, tag = 'scoped memory for _masked_perceptron_impl.1']
    #allocation4 [shape = 'u8[4096]{0}', space=vmem, size = 0x1000, scoped, tag = 'output window, operand 1, single buffered']
    #allocation5 [shape = 's32[1]{0}', space=sflag, size = 0x4, scoped, tag = 'scoped memory for _masked_perceptron_impl.1']
    %14 = vsyncpa [#allocation3], 0
    %15 = vsyncpa [#allocation5], 0
    // Predicated region
    $region2: #{_masked_perceptron_impl.1} parent=1 // pred_check
      _
    $region3: #{_masked_perceptron_impl.1} parent=1 // pred_check_branch
      %17 = sbr.rel (0) target = $region5
    $region4: #{_masked_perceptron_impl.1} parent=1 // pred_region
      _
    $region5: #{_masked_perceptron_impl.1} parent=1 // pred_fallthru
      _
    // Predicated region
    $region6: #{_masked_perceptron_impl.1} parent=1 // pred_check
      _
    $region7: #{_masked_perceptron_impl.1} parent=1 // pred_check_branch
      %19 = sbr.rel (0) target = $region9
    $region8: #{_masked_perceptron_impl.1} parent=1 // pred_region
      _
    $region9: #{_masked_perceptron_impl.1} parent=1 // pred_fallthru
      _
    // Predicated region
    $region10: #{_masked_perceptron_impl.1} parent=1 // pred_check
      _
    $region11: #{_masked_perceptron_impl.1} parent=1 // pred_check_branch
      %21 = sbr.rel (0) target = $region13
    $region12: #{_masked_perceptron_impl.1} parent=1 // pred_region
      _
    $region13: #{_masked_perceptron_impl.1} parent=1 // pred_fallthru
      _
    // Predicated region
    $region14: #{_masked_perceptron_impl.1} parent=1 // pred_check
      _
    $region15: #{_masked_perceptron_impl.1} parent=1 // pred_check_branch
      %23 = sbr.rel (0) target = $region17
    $region16: #{_masked_perceptron_impl.1} parent=1 // pred_region
      _
    $region17: #{_masked_perceptron_impl.1} parent=1 // pred_fallthru
      _
    // Predicated region
    $region18: #{_masked_perceptron_impl.1} parent=1 // pred_check
      _
    $region19: #{_masked_perceptron_impl.1} parent=1 // pred_check_branch
      %25 = sbr.rel (0) target = $region21
    $region20: #{_masked_perceptron_impl.1} parent=1 // pred_region
      _
    $region21: #{_masked_perceptron_impl.1} parent=1 // pred_fallthru
      _
    // Predicated region
    $region22: #{_masked_perceptron_impl.1} parent=1 // pred_check
      _
    $region23: #{_masked_perceptron_impl.1} parent=1 // pred_check_branch
      %27 = sbr.rel (0) target = $region25
    $region24: #{_masked_perceptron_impl.1} parent=1 // pred_region
      _
    $region25: #{_masked_perceptron_impl.1} parent=1 // pred_fallthru
      _
    // Predicated region
    $region26: #{_masked_perceptron_impl.1} parent=1 // pred_check
      _
    $region27: #{_masked_perceptron_impl.1} parent=1 // pred_check_branch
      %29 = sbr.rel (0) target = $region29
    $region28: #{_masked_perceptron_impl.1} parent=1 // pred_region
      _
    $region29: #{_masked_perceptron_impl.1} parent=1 // pred_fallthru
      _
    %v30 = vld [vmem:[%s0] sm:$0xff]
    %v31 = vld [vmem:[%s1] sm:$0xff]
    %v32 = vmul.f32 %v30, %v31
    %v33 = vld [vmem:[%s3] sm:$0xff]
    %v34 = vld [vmem:[%s3 + $0x8] sm:$0xff]
    %v35 = vld [vmem:[%s4] sm:$0x1]
    %v37 = vlaneseq
    %v38 = vshrl.u32 %v37, 7
    %v39 = vsub.s32 0, %v38
    %v40 = vrot.slane %v35, %v39
    %vm42 = vcmask 130048
    %v44 = vsel %vm42, %v32, 0
    %46 = vmatprep.subr.mxu0 0.0
    %47 = vmatpush1.msra.mxu0 %v33
    %48 = vmatprep.subr.mxu0 0.0
    %49 = vmatpush1.msra.mxu0 %v34
    %50 = vmatprep.subr.mxu0 0.0
    %51 = vmatpush1.msra.mxu0 0.0
    %52 = vmatprep.subr.mxu0 0.0
    %53 = vmatpush1.msra.mxu0 0.0
    %54 = vmatprep.subr.mxu0 0.0
    %55 = vmatpush1.msra.mxu0 0.0
    %56 = vmatprep.subr.mxu0 0.0
    %57 = vmatpush1.msra.mxu0 0.0
    %58 = vmatprep.subr.mxu0 0.0
    %59 = vmatpush1.msra.mxu0 0.0
    %60 = vmatprep.subr.mxu0 0.0
    %61 = vmatpush1.msra.mxu0 0.0
    %62 = vmatprep.subr.mxu0 0.0
    %63 = vmatpush1.msra.mxu0 0.0
    %64 = vmatprep.subr.mxu0 0.0
    %65 = vmatpush1.msra.mxu0 0.0
    %66 = vmatprep.subr.mxu0 0.0
    %67 = vmatpush1.msra.mxu0 0.0
    %68 = vmatprep.subr.mxu0 0.0
    %69 = vmatpush1.msra.mxu0 0.0
    %70 = vmatprep.subr.mxu0 0.0
    %71 = vmatpush1.msra.mxu0 0.0
    %72 = vmatprep.subr.mxu0 0.0
    %73 = vmatpush1.msra.mxu0 0.0
    %74 = vmatprep.subr.mxu0 0.0
    %75 = vmatpush1.msra.mxu0 0.0
    %76 = vmatprep.subr.mxu0 0.0
    %77 = vmatpush1.msra.mxu0 0.0
    %78 = vmatprep.subr.mxu0 0.0
    %79 = vmatpush1.msra.mxu0 0.0
    %80 = vmatprep.subr.mxu0 0.0
    %81 = vmatpush1.msra.mxu0 0.0
    %82 = vmatprep.subr.mxu0 0.0
    %83 = vmatpush1.msra.mxu0 0.0
    %84 = vmatprep.subr.mxu0 0.0
    %85 = vmatpush1.msra.mxu0 0.0
    %86 = vmatprep.subr.mxu0 0.0
    %87 = vmatpush1.msra.mxu0 0.0
    %88 = vmatprep.subr.mxu0 0.0
    %89 = vmatpush1.msra.mxu0 0.0
    %90 = vmatprep.subr.mxu0 0.0
    %91 = vmatpush1.msra.mxu0 0.0
    %92 = vmatprep.subr.mxu0 0.0
    %93 = vmatpush1.msra.mxu0 0.0
    %94 = vmatprep.subr.mxu0 0.0
    %95 = vmatpush1.msra.mxu0 0.0
    %96 = vmatprep.subr.mxu0 0.0
    %97 = vmatpush1.msra.mxu0 0.0
    %98 = vmatprep.subr.mxu0 0.0
    %99 = vmatpush1.msra.mxu0 0.0
    %100 = vmatprep.subr.mxu0 0.0
    %101 = vmatpush1.msra.mxu0 0.0
    %102 = vmatprep.subr.mxu0 0.0
    %103 = vmatpush1.msra.mxu0 0.0
    %104 = vmatprep.subr.mxu0 0.0
    %105 = vmatpush1.msra.mxu0 0.0
    %106 = vmatprep.subr.mxu0 0.0
    %107 = vmatpush1.msra.mxu0 0.0
    %108 = vmatprep.subr.mxu0 0.0
    %109 = vmatpush1.msra.mxu0 0.0
    %110 = vmatprep.mubr.f32.mxu0 0.0
    %111 = vmatmul.mubr.f32.gmra.mrb[0].mxu0 %v44
    %v112 = vpop.f32.mrb[0].mxu0
    %v113 = vadd.f32 %v40, %v112
    %v114 = vpop.f32.mrb[0].mxu0
    %115 = vdwg.mxu0
    %v116 = vmax.f32 %v113, 0.0
    %v117 = vld [vmem:[%s2] sm:$0xff]
    %v118 = vadd.f32 %v116, %v117
    %vm119 = vcmask 261120
    %120 = vst.msk [vmem:[#allocation4] sm:$0xff] %vm119, %v118
    %v121 = vld [vmem:[%s5] sm:$0xff]
    %v122 = vld [vmem:[%s5 + $0x8] sm:$0xff]
    %v123 = vld [vmem:[%s5 + $0x10] sm:$0xff]
    %v124 = vld [vmem:[%s5 + $0x18] sm:$0xff]
    %v125 = vld [vmem:[%s6] sm:$0x1]
    %v127 = vlaneseq
    %v128 = vshrl.u32 %v127, 7
    %v129 = vsub.s32 0, %v128
    %v130 = vrot.slane %v125, %v129
    %v133 = vsel %vm119, %v118, 0
    %135 = vmatprep.subr.mxu0 0.0
    %136 = vmatpush1.msra.mxu0 %v121
    %137 = vmatprep.subr.mxu0 0.0
    %138 = vmatpush1.msra.mxu0 %v122
    %139 = vmatprep.subr.mxu0 0.0
    %140 = vmatpush1.msra.mxu0 %v123
    %141 = vmatprep.subr.mxu0 0.0
    %142 = vmatpush1.msra.mxu0 %v124
    %143 = vmatprep.subr.mxu0 0.0
    %144 = vmatpush1.msra.mxu0 0.0
    %145 = vmatprep.subr.mxu0 0.0
    %146 = vmatpush1.msra.mxu0 0.0
    %147 = vmatprep.subr.mxu0 0.0
    %148 = vmatpush1.msra.mxu0 0.0
    %149 = vmatprep.subr.mxu0 0.0
    %150 = vmatpush1.msra.mxu0 0.0
    %151 = vmatprep.subr.mxu0 0.0
    %152 = vmatpush1.msra.mxu0 0.0
    %153 = vmatprep.subr.mxu0 0.0
    %154 = vmatpush1.msra.mxu0 0.0
    %155 = vmatprep.subr.mxu0 0.0
    %156 = vmatpush1.msra.mxu0 0.0
    %157 = vmatprep.subr.mxu0 0.0
    %158 = vmatpush1.msra.mxu0 0.0
    %159 = vmatprep.subr.mxu0 0.0
    %160 = vmatpush1.msra.mxu0 0.0
    %161 = vmatprep.subr.mxu0 0.0
    %162 = vmatpush1.msra.mxu0 0.0
    %163 = vmatprep.subr.mxu0 0.0
    %164 = vmatpush1.msra.mxu0 0.0
    %165 = vmatprep.subr.mxu0 0.0
    %166 = vmatpush1.msra.mxu0 0.0
    %167 = vmatprep.subr.mxu0 0.0
    %168 = vmatpush1.msra.mxu0 0.0
    %169 = vmatprep.subr.mxu0 0.0
    %170 = vmatpush1.msra.mxu0 0.0
    %171 = vmatprep.subr.mxu0 0.0
    %172 = vmatpush1.msra.mxu0 0.0
    %173 = vmatprep.subr.mxu0 0.0
    %174 = vmatpush1.msra.mxu0 0.0
    %175 = vmatprep.subr.mxu0 0.0
    %176 = vmatpush1.msra.mxu0 0.0
    %177 = vmatprep.subr.mxu0 0.0
    %178 = vmatpush1.msra.mxu0 0.0
    %179 = vmatprep.subr.mxu0 0.0
    %180 = vmatpush1.msra.mxu0 0.0
    %181 = vmatprep.subr.mxu0 0.0
    %182 = vmatpush1.msra.mxu0 0.0
    %183 = vmatprep.subr.mxu0 0.0
    %184 = vmatpush1.msra.mxu0 0.0
    %185 = vmatprep.subr.mxu0 0.0
    %186 = vmatpush1.msra.mxu0 0.0
    %187 = vmatprep.subr.mxu0 0.0
    %188 = vmatpush1.msra.mxu0 0.0
    %189 = vmatprep.subr.mxu0 0.0
    %190 = vmatpush1.msra.mxu0 0.0
    %191 = vmatprep.subr.mxu0 0.0
    %192 = vmatpush1.msra.mxu0 0.0
    %193 = vmatprep.subr.mxu0 0.0
    %194 = vmatpush1.msra.mxu0 0.0
    %195 = vmatprep.subr.mxu0 0.0
    %196 = vmatpush1.msra.mxu0 0.0
    %197 = vmatprep.subr.mxu0 0.0
    %198 = vmatpush1.msra.mxu0 0.0
    %199 = vmatprep.mubr.f32.mxu0 0.0
    %200 = vmatmul.mubr.f32.gmra.mrb[0].mxu0 %v133
    %v201 = vpop.f32.mrb[0].mxu0
    %v202 = vadd.f32 %v130, %v201
    %v203 = vpop.f32.mrb[0].mxu0
    %204 = vdwg.mxu0
    %vm205 = vcmask 64512
    %206 = vst.msk [vmem:[#allocation2] sm:$0xff] %vm205, %v202
    // Predicated region
    $region30: #{_masked_perceptron_impl.1} parent=1 // pred_check
      _
    $region31: #{_masked_perceptron_impl.1} parent=1 // pred_check_branch
      %208 = sbr.rel (0) target = $region33
    $region32: #{_masked_perceptron_impl.1} parent=1 // pred_region
      %s210 = ssub.s32 128, 128
      %211 = vsyncadd [#allocation3], %s210
      %s213 = sshll.u32 [#allocation2], 4
      %s214 = int_to_ptr.vmem [resolvable:$true] %s213
      %216 = dma.vmem_to_hbm [thread:$0]  %s214, 128, %s7, [#allocation3]
    $region33: #{_masked_perceptron_impl.1} parent=1 // pred_fallthru
      _
    // Predicated region
    $region34: #{_masked_perceptron_impl.1} parent=1 // pred_check
      _
    $region35: #{_masked_perceptron_impl.1} parent=1 // pred_check_branch
      %218 = sbr.rel (0) target = $region37
    $region36: #{_masked_perceptron_impl.1} parent=1 // pred_region
      %s220 = ssub.s32 128, 128
      %221 = vsyncadd [#allocation5], %s220
      %s223 = sshll.u32 [#allocation4], 4
      %s224 = int_to_ptr.vmem [resolvable:$true] %s223
      %226 = dma.vmem_to_hbm [thread:$0]  %s224, 128, %s8, [#allocation5]
    $region37: #{_masked_perceptron_impl.1} parent=1 // pred_fallthru
      _
    // Predicated region
    $region38: #{_masked_perceptron_impl.1} parent=1 // pred_check
      _
    $region39: #{_masked_perceptron_impl.1} parent=1 // pred_check_branch
      %228 = sbr.rel (0) target = $region41
    $region40: #{_masked_perceptron_impl.1} parent=1 // pred_region
      %229 = dma.done [#allocation3], 128
    $region41: #{_masked_perceptron_impl.1} parent=1 // pred_fallthru
      _
    // Predicated region
    $region42: #{_masked_perceptron_impl.1} parent=1 // pred_check
      _
    $region43: #{_masked_perceptron_impl.1} parent=1 // pred_check_branch
      %231 = sbr.rel (0) target = $region45
    $region44: #{_masked_perceptron_impl.1} parent=1 // pred_region
      %232 = dma.done [#allocation5], 128
    $region45: #{_masked_perceptron_impl.1} parent=1 // pred_fallthru
      _
    %233 = vsyncpa [#allocation3], 1
    %234 = vsyncpa [#allocation5], 1

</llo_original>
